<compile_context>
chip_gen: v5e
topology: v5e:2x2
jax: 0.10.0
libtpu: 0.0.40
codegen_flags: <defaults>
</compile_context>

<pallas_src>
from collections import namedtuple

import jax
import jax.numpy as jnp
import numpy as np
from jax import lax
from jax.experimental import pallas as pl
from jax.experimental.pallas import tpu as pltpu

_LANE = 128
_TARGET_TILE_BYTES = 1 << 20      # ~1 MiB per stream tile (amortizes grid-step overhead)
_NUM_CORE_SPLITS = 2              # leading "parallel" grid axis for v7x megacore

_Stream = namedtuple("_Stream", ["kind", "rows", "lanes", "tile_rows", "n_tiles"])


def _cdiv(a, b):
    return -(-a // b)


def _round_up(n, m):
    return ((n + m - 1) // m) * m


def _sublane(dtype):
    # Sublane packing granularity: 8 rows for 4-byte dtypes, 16 for 2-byte, 32 for 1-byte.
    return max(8, 32 // jnp.dtype(dtype).itemsize)


def _softplus(x):
    # Numerically stable softplus: max(x, 0) + log1p(exp(-|x|))
    return jnp.maximum(x, 0.0) + jnp.log1p(jnp.exp(-jnp.abs(x)))


def _make_kernel(streams, n_half):
    """streams: tuple of _Stream with static (Python int) metadata."""
    n_streams = len(streams)

    def kernel(*refs):
        reg_ref = refs[0]                         # (1, 1) f32 in SMEM
        in_refs = refs[1:1 + n_streams]           # streamed tiles
        out_ref = refs[1 + n_streams]             # (1, 8, 128) per-core partial
        acc_refs = refs[2 + n_streams:]           # per-stream (8, lanes) f32 VMEM

        i = pl.program_id(0)                      # core-split axis ("parallel")
        j = pl.program_id(1)                      # streaming axis ("arbitrary")
        jg = i * n_half + j                       # global tile index for this core

        @pl.when(j == 0)
        def _init():
            for acc in acc_refs:
                acc[...] = jnp.zeros_like(acc)

        # Process every live stream this step: softplus goes to the EUP slot,
        # squares and the accumulator adds go to the VALU slot, so they hide
        # under each other while the tiles stream from HBM.
        for s, ref, acc in zip(streams, in_refs, acc_refs):
            @pl.when(jg < s.n_tiles)
            def _process(s=s, ref=ref, acc=acc):
                v = ref[...].astype(jnp.float32)          # cast in-kernel
                if s.kind == "neg":
                    c = _softplus(v)
                elif s.kind == "pos":
                    c = _softplus(-v)
                else:  # "sq" -> L2 term
                    c = v * v
                if s.rows % s.tile_rows != 0:
                    # Mask rows of the (padded) edge tile that lie past the array.
                    row = jg * s.tile_rows + lax.broadcasted_iota(
                        jnp.int32, c.shape, 0)
                    c = jnp.where(row < s.rows, c, 0.0)
                # Sublane-wise accumulate: pure VALU adds, no cross-lane reduce.
                acc[...] += c.reshape(-1, 8, s.lanes).sum(axis=0)

        @pl.when(j == pl.num_programs(1) - 1)
        def _finalize():
            score_sum = jnp.float32(0.0)
            emb_sum = jnp.float32(0.0)
            for s, acc in zip(streams, acc_refs):
                if s.kind == "sq":
                    emb_sum = emb_sum + jnp.sum(acc[...])
                else:
                    score_sum = score_sum + jnp.sum(acc[...])
            partial = score_sum + reg_ref[0, 0] * 0.5 * emb_sum
            out_ref[...] = jnp.broadcast_to(partial, out_ref.shape)

    return kernel


def _block_index_map(n_tiles, n_half):
    def index_map(i, j):
        return (jnp.minimum(i * n_half + j, n_tiles - 1), 0)
    return index_map


def simple_loss_pallas(pos_score, neg_score, ent_h, ent_t, rel, rel_inv,
                       regularization):
    """Returns the scalar SimplE loss."""
    raw = [
        (neg_score, "neg"),
        (pos_score, "pos"),
        (ent_h, "sq"),
        (ent_t, "sq"),
        (rel, "sq"),
        (rel_inv, "sq"),
    ]

    arrays, kinds = [], []
    for x, kind in raw:
        if x.ndim != 2:
            # Row-major collapse of leading dims (free reshape, no relayout).
            x = x.reshape(-1, x.shape[-1]) if x.ndim > 1 else x.reshape(1, -1)
        arrays.append(x)
        kinds.append(kind)

    # ---- balanced row-tile selection -------------------------------------
    n_steps = 1
    for x in arrays:
        rows, lanes = x.shape
        itemsize = jnp.dtype(x.dtype).itemsize
        sub = _sublane(x.dtype)
        lanes_pad = _round_up(lanes, _LANE)
        cap_rows = max(sub,
                       (_TARGET_TILE_BYTES // (lanes_pad * itemsize)) // sub * sub)
        n_steps = max(n_steps, _cdiv(rows, cap_rows))

    streams = []
    for x, kind in zip(arrays, kinds):
        rows, lanes = x.shape
        sub = _sublane(x.dtype)
        tile_rows = _round_up(_cdiv(rows, n_steps), sub)
        n_tiles = _cdiv(rows, tile_rows)
        streams.append(_Stream(kind, rows, lanes, tile_rows, n_tiles))
    streams = tuple(streams)

    n_half = _cdiv(n_steps, _NUM_CORE_SPLITS)

    # ---- specs ------------------------------------------------------------
    in_specs = [pl.BlockSpec(memory_space=pltpu.MemorySpace.SMEM)]  # regularization
    for s in streams:
        in_specs.append(
            pl.BlockSpec((s.tile_rows, s.lanes), _block_index_map(s.n_tiles, n_half)))

    out_spec = pl.BlockSpec((1, 8, _LANE), lambda i, j: (i, 0, 0))
    scratch_shapes = [pltpu.VMEM((8, s.lanes), jnp.float32) for s in streams]

    score_elems = sum(int(np.prod(a.shape)) for a, k in zip(arrays, kinds)
                      if k in ("neg", "pos"))
    emb_elems = sum(int(np.prod(a.shape)) for a, k in zip(arrays, kinds)
                    if k == "sq")
    in_bytes = sum(int(np.prod(a.shape)) * jnp.dtype(a.dtype).itemsize
                   for a in arrays)
    cost = pl.CostEstimate(
        flops=5 * score_elems + 3 * emb_elems,
        transcendentals=2 * score_elems,            # exp + log1p per score elem
        bytes_accessed=in_bytes + _NUM_CORE_SPLITS * 8 * _LANE * 4 + 4,
    )

    reg_arr = jnp.asarray(regularization, jnp.float32).reshape(1, 1)
    kernel = _make_kernel(streams, n_half)

    out = pl.pallas_call(
        kernel,
        out_shape=jax.ShapeDtypeStruct((_NUM_CORE_SPLITS, 8, _LANE), jnp.float32),
        grid_spec=pltpu.PrefetchScalarGridSpec(
            num_scalar_prefetch=0,
            grid=(_NUM_CORE_SPLITS, n_half),
            in_specs=in_specs,
            out_specs=out_spec,
            scratch_shapes=scratch_shapes,
        ),
        compiler_params=pltpu.CompilerParams(
            # Core-split axis is independent (megacore on v7x); the streaming
            # reduction axis must stay serial.
            dimension_semantics=("parallel", "arbitrary"),
        ),
        cost_estimate=cost,
    )(reg_arr, *arrays)

    # Per-core partial sums -> scalar loss (tiny add outside the kernel).
    return out[:, 0, 0].sum()


def simple_loss_ref(pos_score, neg_score, ent_h, ent_t, rel, rel_inv,
                    regularization):
    """Pure-JAX reference mirroring the PyTorch forward exactly."""
    score = jnp.concatenate([neg_score, -pos_score], axis=-1)
    l2 = (jnp.sum(ent_h ** 2) + jnp.sum(ent_t ** 2)
          + jnp.sum(rel ** 2) + jnp.sum(rel_inv ** 2)) / 2.0
    return jnp.sum(jax.nn.softplus(score)) + regularization * l2


if __name__ == "__main__":
    key = jax.random.PRNGKey(0)
    k_pos, k_neg, k_eh, k_et, k_r, k_ri = jax.random.split(key, 6)

    # Small shapes consistent with SimplE training:
    #   batch=8, one positive and 128 negatives per example,
    #   32 entities / 16 relations with embedding dim 32.
    batch, num_neg = 8, 128
    num_ent, num_rel, emb_dim = 32, 16, 32
    regularization = 0.01

    pos_score = jax.random.normal(k_pos, (batch, 1), dtype=jnp.float32)
    neg_score = jax.random.normal(k_neg, (batch, num_neg), dtype=jnp.float32)

    # Deterministic synthetic model parameters (SimplE embedding tables).
    ent_h = 0.1 * jax.random.normal(k_eh, (num_ent, emb_dim), dtype=jnp.float32)
    ent_t = 0.1 * jax.random.normal(k_et, (num_ent, emb_dim), dtype=jnp.float32)
    rel = 0.1 * jax.random.normal(k_r, (num_rel, emb_dim), dtype=jnp.float32)
    rel_inv = 0.1 * jax.random.normal(k_ri, (num_rel, emb_dim), dtype=jnp.float32)

    loss_fn = jax.jit(simple_loss_pallas)
    loss = jax.block_until_ready(
        loss_fn(pos_score, neg_score, ent_h, ent_t, rel, rel_inv, regularization))

    loss_ref = simple_loss_ref(pos_score, neg_score, ent_h, ent_t, rel, rel_inv,
                               regularization)
    np.testing.assert_allclose(np.asarray(loss), np.asarray(loss_ref),
                               rtol=1e-5, atol=1e-5)

    print("KERNEL_OK")
</pallas_src>

<mosaic_0001>
module attributes {stable_mosaic.version = 11 : i64} {
  func.func @kernel(%arg0: i32, %arg1: i32, %arg2: memref<1x1xf32, #tpu.memory_space<smem>>, %arg3: memref<8x128xf32, #tpu.memory_space<vmem>>, %arg4: memref<8x1xf32, #tpu.memory_space<vmem>>, %arg5: memref<32x32xf32, #tpu.memory_space<vmem>>, %arg6: memref<32x32xf32, #tpu.memory_space<vmem>>, %arg7: memref<16x32xf32, #tpu.memory_space<vmem>>, %arg8: memref<16x32xf32, #tpu.memory_space<vmem>>, %arg9: memref<1x8x128xf32, #tpu.memory_space<vmem>>, %arg10: memref<8x128xf32, #tpu.memory_space<vmem>>, %arg11: memref<8x1xf32, #tpu.memory_space<vmem>>, %arg12: memref<8x32xf32, #tpu.memory_space<vmem>>, %arg13: memref<8x32xf32, #tpu.memory_space<vmem>>, %arg14: memref<8x32xf32, #tpu.memory_space<vmem>>, %arg15: memref<8x32xf32, #tpu.memory_space<vmem>>) attributes {dimension_semantics = [#tpu.dimension_semantics<parallel>, #tpu.dimension_semantics<arbitrary>], iteration_bounds = array<i64: 2, 1>, scalar_prefetch = 0 : i64, scratch_operands = 6 : i64, tpu.core_type = #tpu.core_type<tc>, window_params = [{transform_indices = @transform_0, window_bounds = array<i64: 1, 1>}, {transform_indices = @transform_1, window_bounds = array<i64: 8, 128>}, {transform_indices = @transform_2, window_bounds = array<i64: 8, 1>}, {transform_indices = @transform_3, window_bounds = array<i64: 32, 32>}, {transform_indices = @transform_4, window_bounds = array<i64: 32, 32>}, {transform_indices = @transform_5, window_bounds = array<i64: 16, 32>}, {transform_indices = @transform_6, window_bounds = array<i64: 16, 32>}, {transform_indices = @transform_7, window_bounds = array<i64: 1, 8, 128>}]} {
    %c1_i32 = arith.constant 1 : i32
    %0 = arith.muli %arg0, %c1_i32 : i32
    %1 = arith.addi %0, %arg1 : i32
    %c0_i32 = arith.constant 0 : i32
    %2 = arith.cmpi eq, %arg1, %c0_i32 : i32
    %3 = arith.extui %2 : i1 to i32
    %c0_i32_0 = arith.constant 0 : i32
    %4 = arith.cmpi ne, %3, %c0_i32_0 : i32
    scf.if %4 {
      %cst = arith.constant 0.000000e+00 : f32
      %26 = vector.broadcast %cst : f32 to vector<8x128xf32>
      %c0 = arith.constant 0 : index
      %c0_15 = arith.constant 0 : index
      %27 = vector.load %arg10[%c0, %c0_15] : memref<8x128xf32, #tpu.memory_space<vmem>>, vector<8x128xf32>
      tpu.vector_store %arg10[%c0, %c0_15], %26 {strides = array<i32>} : memref<8x128xf32, #tpu.memory_space<vmem>>, vector<8x128xf32>,
      %cst_16 = arith.constant 0.000000e+00 : f32
      %28 = vector.broadcast %cst_16 : f32 to vector<8x1xf32>
      %c0_17 = arith.constant 0 : index
      %c0_18 = arith.constant 0 : index
      %29 = vector.load %arg11[%c0_17, %c0_18] : memref<8x1xf32, #tpu.memory_space<vmem>>, vector<8x1xf32>
      tpu.vector_store %arg11[%c0_17, %c0_18], %28 {strides = array<i32>} : memref<8x1xf32, #tpu.memory_space<vmem>>, vector<8x1xf32>,
      %cst_19 = arith.constant 0.000000e+00 : f32
      %30 = vector.broadcast %cst_19 : f32 to vector<8x32xf32>
      %c0_20 = arith.constant 0 : index
      %c0_21 = arith.constant 0 : index
      %31 = vector.load %arg12[%c0_20, %c0_21] : memref<8x32xf32, #tpu.memory_space<vmem>>, vector<8x32xf32>
      tpu.vector_store %arg12[%c0_20, %c0_21], %30 {strides = array<i32>} : memref<8x32xf32, #tpu.memory_space<vmem>>, vector<8x32xf32>,
      %cst_22 = arith.constant 0.000000e+00 : f32
      %32 = vector.broadcast %cst_22 : f32 to vector<8x32xf32>
      %c0_23 = arith.constant 0 : index
      %c0_24 = arith.constant 0 : index
      %33 = vector.load %arg13[%c0_23, %c0_24] : memref<8x32xf32, #tpu.memory_space<vmem>>, vector<8x32xf32>
      tpu.vector_store %arg13[%c0_23, %c0_24], %32 {strides = array<i32>} : memref<8x32xf32, #tpu.memory_space<vmem>>, vector<8x32xf32>,
      %cst_25 = arith.constant 0.000000e+00 : f32
      %34 = vector.broadcast %cst_25 : f32 to vector<8x32xf32>
      %c0_26 = arith.constant 0 : index
      %c0_27 = arith.constant 0 : index
      %35 = vector.load %arg14[%c0_26, %c0_27] : memref<8x32xf32, #tpu.memory_space<vmem>>, vector<8x32xf32>
      tpu.vector_store %arg14[%c0_26, %c0_27], %34 {strides = array<i32>} : memref<8x32xf32, #tpu.memory_space<vmem>>, vector<8x32xf32>,
      %cst_28 = arith.constant 0.000000e+00 : f32
      %36 = vector.broadcast %cst_28 : f32 to vector<8x32xf32>
      %c0_29 = arith.constant 0 : index
      %c0_30 = arith.constant 0 : index
      %37 = vector.load %arg15[%c0_29, %c0_30] : memref<8x32xf32, #tpu.memory_space<vmem>>, vector<8x32xf32>
      tpu.vector_store %arg15[%c0_29, %c0_30], %36 {strides = array<i32>} : memref<8x32xf32, #tpu.memory_space<vmem>>, vector<8x32xf32>,
    } else {
    }
    %c1_i32_1 = arith.constant 1 : i32
    %5 = arith.cmpi slt, %1, %c1_i32_1 : i32
    %6 = arith.extui %5 : i1 to i32
    %c0_i32_2 = arith.constant 0 : i32
    %7 = arith.cmpi ne, %6, %c0_i32_2 : i32
    scf.if %7 {
      %c0 = arith.constant 0 : index
      %c0_15 = arith.constant 0 : index
      %26 = vector.load %arg3[%c0, %c0_15] : memref<8x128xf32, #tpu.memory_space<vmem>>, vector<8x128xf32>
      %cst = arith.constant 0.000000e+00 : f32
      %27 = vector.broadcast %cst : f32 to vector<8x128xf32>
      %28 = arith.maximumf %26, %27 : vector<8x128xf32>
      %29 = math.absf %26 : vector<8x128xf32>
      %cst_16 = arith.constant 0.000000e+00 : f32
      %30 = vector.broadcast %cst_16 : f32 to vector<8x128xf32>
      %31 = arith.subf %30, %29 : vector<8x128xf32>
      %32 = math.exp %31 : vector<8x128xf32>
      %33 = math.log1p %32 : vector<8x128xf32>
      %34 = arith.addf %28, %33 : vector<8x128xf32>
      %c0_17 = arith.constant 0 : index
      %c0_18 = arith.constant 0 : index
      %35 = vector.load %arg10[%c0_17, %c0_18] : memref<8x128xf32, #tpu.memory_space<vmem>>, vector<8x128xf32>
      %36 = vector.shape_cast %34 : vector<8x128xf32> to vector<1x8x128xf32>
      %cst_19 = arith.constant dense<0.000000e+00> : vector<8x128xf32>
      %37 = vector.multi_reduction <add>, %36, %cst_19 [0] : vector<1x8x128xf32> to vector<8x128xf32>
      %38 = arith.addf %35, %37 : vector<8x128xf32>
      %c0_20 = arith.constant 0 : index
      %c0_21 = arith.constant 0 : index
      %39 = vector.load %arg10[%c0_20, %c0_21] : memref<8x128xf32, #tpu.memory_space<vmem>>, vector<8x128xf32>
      tpu.vector_store %arg10[%c0_20, %c0_21], %38 {strides = array<i32>} : memref<8x128xf32, #tpu.memory_space<vmem>>, vector<8x128xf32>,
    } else {
    }
    %c1_i32_3 = arith.constant 1 : i32
    %8 = arith.cmpi slt, %1, %c1_i32_3 : i32
    %9 = arith.extui %8 : i1 to i32
    %c0_i32_4 = arith.constant 0 : i32
    %10 = arith.cmpi ne, %9, %c0_i32_4 : i32
    scf.if %10 {
      %c0 = arith.constant 0 : index
      %c0_15 = arith.constant 0 : index
      %26 = vector.load %arg4[%c0, %c0_15] : memref<8x1xf32, #tpu.memory_space<vmem>>, vector<8x1xf32>
      %cst = arith.constant 0.000000e+00 : f32
      %27 = vector.broadcast %cst : f32 to vector<8x1xf32>
      %28 = arith.subf %27, %26 : vector<8x1xf32>
      %cst_16 = arith.constant 0.000000e+00 : f32
      %29 = vector.broadcast %cst_16 : f32 to vector<8x1xf32>
      %30 = arith.maximumf %28, %29 : vector<8x1xf32>
      %31 = math.absf %28 : vector<8x1xf32>
      %cst_17 = arith.constant 0.000000e+00 : f32
      %32 = vector.broadcast %cst_17 : f32 to vector<8x1xf32>
      %33 = arith.subf %32, %31 : vector<8x1xf32>
      %34 = math.exp %33 : vector<8x1xf32>
      %35 = math.log1p %34 : vector<8x1xf32>
      %36 = arith.addf %30, %35 : vector<8x1xf32>
      %c0_18 = arith.constant 0 : index
      %c0_19 = arith.constant 0 : index
      %37 = vector.load %arg11[%c0_18, %c0_19] : memref<8x1xf32, #tpu.memory_space<vmem>>, vector<8x1xf32>
      %38 = vector.shape_cast %36 : vector<8x1xf32> to vector<1x8x1xf32>
      %cst_20 = arith.constant dense<0.000000e+00> : vector<8x1xf32>
      %39 = vector.multi_reduction <add>, %38, %cst_20 [0] : vector<1x8x1xf32> to vector<8x1xf32>
      %40 = arith.addf %37, %39 : vector<8x1xf32>
      %c0_21 = arith.constant 0 : index
      %c0_22 = arith.constant 0 : index
      %41 = vector.load %arg11[%c0_21, %c0_22] : memref<8x1xf32, #tpu.memory_space<vmem>>, vector<8x1xf32>
      tpu.vector_store %arg11[%c0_21, %c0_22], %40 {strides = array<i32>} : memref<8x1xf32, #tpu.memory_space<vmem>>, vector<8x1xf32>,
    } else {
    }
    %c1_i32_5 = arith.constant 1 : i32
    %11 = arith.cmpi slt, %1, %c1_i32_5 : i32
    %12 = arith.extui %11 : i1 to i32
    %c0_i32_6 = arith.constant 0 : i32
    %13 = arith.cmpi ne, %12, %c0_i32_6 : i32
    scf.if %13 {
      %c0 = arith.constant 0 : index
      %c0_15 = arith.constant 0 : index
      %26 = vector.load %arg5[%c0, %c0_15] : memref<32x32xf32, #tpu.memory_space<vmem>>, vector<32x32xf32>
      %27 = arith.mulf %26, %26 : vector<32x32xf32>
      %c0_16 = arith.constant 0 : index
      %c0_17 = arith.constant 0 : index
      %28 = vector.load %arg12[%c0_16, %c0_17] : memref<8x32xf32, #tpu.memory_space<vmem>>, vector<8x32xf32>
      %29 = vector.shape_cast %27 : vector<32x32xf32> to vector<4x8x32xf32>
      %cst = arith.constant dense<0.000000e+00> : vector<8x32xf32>
      %30 = vector.multi_reduction <add>, %29, %cst [0] : vector<4x8x32xf32> to vector<8x32xf32>
      %31 = arith.addf %28, %30 : vector<8x32xf32>
      %c0_18 = arith.constant 0 : index
      %c0_19 = arith.constant 0 : index
      %32 = vector.load %arg12[%c0_18, %c0_19] : memref<8x32xf32, #tpu.memory_space<vmem>>, vector<8x32xf32>
      tpu.vector_store %arg12[%c0_18, %c0_19], %31 {strides = array<i32>} : memref<8x32xf32, #tpu.memory_space<vmem>>, vector<8x32xf32>,
    } else {
    }
    %c1_i32_7 = arith.constant 1 : i32
    %14 = arith.cmpi slt, %1, %c1_i32_7 : i32
    %15 = arith.extui %14 : i1 to i32
    %c0_i32_8 = arith.constant 0 : i32
    %16 = arith.cmpi ne, %15, %c0_i32_8 : i32
    scf.if %16 {
      %c0 = arith.constant 0 : index
      %c0_15 = arith.constant 0 : index
      %26 = vector.load %arg6[%c0, %c0_15] : memref<32x32xf32, #tpu.memory_space<vmem>>, vector<32x32xf32>
      %27 = arith.mulf %26, %26 : vector<32x32xf32>
      %c0_16 = arith.constant 0 : index
      %c0_17 = arith.constant 0 : index
      %28 = vector.load %arg13[%c0_16, %c0_17] : memref<8x32xf32, #tpu.memory_space<vmem>>, vector<8x32xf32>
      %29 = vector.shape_cast %27 : vector<32x32xf32> to vector<4x8x32xf32>
      %cst = arith.constant dense<0.000000e+00> : vector<8x32xf32>
      %30 = vector.multi_reduction <add>, %29, %cst [0] : vector<4x8x32xf32> to vector<8x32xf32>
      %31 = arith.addf %28, %30 : vector<8x32xf32>
      %c0_18 = arith.constant 0 : index
      %c0_19 = arith.constant 0 : index
      %32 = vector.load %arg13[%c0_18, %c0_19] : memref<8x32xf32, #tpu.memory_space<vmem>>, vector<8x32xf32>
      tpu.vector_store %arg13[%c0_18, %c0_19], %31 {strides = array<i32>} : memref<8x32xf32, #tpu.memory_space<vmem>>, vector<8x32xf32>,
    } else {
    }
    %c1_i32_9 = arith.constant 1 : i32
    %17 = arith.cmpi slt, %1, %c1_i32_9 : i32
    %18 = arith.extui %17 : i1 to i32
    %c0_i32_10 = arith.constant 0 : i32
    %19 = arith.cmpi ne, %18, %c0_i32_10 : i32
    scf.if %19 {
      %c0 = arith.constant 0 : index
      %c0_15 = arith.constant 0 : index
      %26 = vector.load %arg7[%c0, %c0_15] : memref<16x32xf32, #tpu.memory_space<vmem>>, vector<16x32xf32>
      %27 = arith.mulf %26, %26 : vector<16x32xf32>
      %c0_16 = arith.constant 0 : index
      %c0_17 = arith.constant 0 : index
      %28 = vector.load %arg14[%c0_16, %c0_17] : memref<8x32xf32, #tpu.memory_space<vmem>>, vector<8x32xf32>
      %29 = vector.shape_cast %27 : vector<16x32xf32> to vector<2x8x32xf32>
      %cst = arith.constant dense<0.000000e+00> : vector<8x32xf32>
      %30 = vector.multi_reduction <add>, %29, %cst [0] : vector<2x8x32xf32> to vector<8x32xf32>
      %31 = arith.addf %28, %30 : vector<8x32xf32>
      %c0_18 = arith.constant 0 : index
      %c0_19 = arith.constant 0 : index
      %32 = vector.load %arg14[%c0_18, %c0_19] : memref<8x32xf32, #tpu.memory_space<vmem>>, vector<8x32xf32>
      tpu.vector_store %arg14[%c0_18, %c0_19], %31 {strides = array<i32>} : memref<8x32xf32, #tpu.memory_space<vmem>>, vector<8x32xf32>,
    } else {
    }
    %c1_i32_11 = arith.constant 1 : i32
    %20 = arith.cmpi slt, %1, %c1_i32_11 : i32
    %21 = arith.extui %20 : i1 to i32
    %c0_i32_12 = arith.constant 0 : i32
    %22 = arith.cmpi ne, %21, %c0_i32_12 : i32
    scf.if %22 {
      %c0 = arith.constant 0 : index
      %c0_15 = arith.constant 0 : index
      %26 = vector.load %arg8[%c0, %c0_15] : memref<16x32xf32, #tpu.memory_space<vmem>>, vector<16x32xf32>
      %27 = arith.mulf %26, %26 : vector<16x32xf32>
      %c0_16 = arith.constant 0 : index
      %c0_17 = arith.constant 0 : index
      %28 = vector.load %arg15[%c0_16, %c0_17] : memref<8x32xf32, #tpu.memory_space<vmem>>, vector<8x32xf32>
      %29 = vector.shape_cast %27 : vector<16x32xf32> to vector<2x8x32xf32>
      %cst = arith.constant dense<0.000000e+00> : vector<8x32xf32>
      %30 = vector.multi_reduction <add>, %29, %cst [0] : vector<2x8x32xf32> to vector<8x32xf32>
      %31 = arith.addf %28, %30 : vector<8x32xf32>
      %c0_18 = arith.constant 0 : index
      %c0_19 = arith.constant 0 : index
      %32 = vector.load %arg15[%c0_18, %c0_19] : memref<8x32xf32, #tpu.memory_space<vmem>>, vector<8x32xf32>
      tpu.vector_store %arg15[%c0_18, %c0_19], %31 {strides = array<i32>} : memref<8x32xf32, #tpu.memory_space<vmem>>, vector<8x32xf32>,
    } else {
    }
    %c0_i32_13 = arith.constant 0 : i32
    %23 = arith.cmpi eq, %arg1, %c0_i32_13 : i32
    %24 = arith.extui %23 : i1 to i32
    %c0_i32_14 = arith.constant 0 : i32
    %25 = arith.cmpi ne, %24, %c0_i32_14 : i32
    scf.if %25 {
      %c0 = arith.constant 0 : index
      %c0_15 = arith.constant 0 : index
      %26 = vector.load %arg10[%c0, %c0_15] : memref<8x128xf32, #tpu.memory_space<vmem>>, vector<8x128xf32>
      %27 = vector.shape_cast %26 : vector<8x128xf32> to vector<1x8x128xf32>
      %cst = arith.constant dense<0.000000e+00> : vector<1xf32>
      %28 = vector.multi_reduction <add>, %27, %cst [1, 2] : vector<1x8x128xf32> to vector<1xf32>
      %29 = vector.shape_cast %28 : vector<1xf32> to vector<1x1x1xf32>
      %30 = vector.extract %29[0, 0, 0] : f32 from vector<1x1x1xf32>
      %cst_16 = arith.constant 0.000000e+00 : f32
      %31 = arith.addf %cst_16, %30 : f32
      %c0_17 = arith.constant 0 : index
      %c0_18 = arith.constant 0 : index
      %32 = vector.load %arg11[%c0_17, %c0_18] : memref<8x1xf32, #tpu.memory_space<vmem>>, vector<8x1xf32>
      %33 = vector.shape_cast %32 : vector<8x1xf32> to vector<1x8x1xf32>
      %cst_19 = arith.constant dense<0.000000e+00> : vector<1xf32>
      %34 = vector.multi_reduction <add>, %33, %cst_19 [1, 2] : vector<1x8x1xf32> to vector<1xf32>
      %35 = vector.shape_cast %34 : vector<1xf32> to vector<1x1x1xf32>
      %36 = vector.extract %35[0, 0, 0] : f32 from vector<1x1x1xf32>
      %37 = arith.addf %31, %36 : f32
      %c0_20 = arith.constant 0 : index
      %c0_21 = arith.constant 0 : index
      %38 = vector.load %arg12[%c0_20, %c0_21] : memref<8x32xf32, #tpu.memory_space<vmem>>, vector<8x32xf32>
      %39 = vector.shape_cast %38 : vector<8x32xf32> to vector<1x8x32xf32>
      %cst_22 = arith.constant dense<0.000000e+00> : vector<1xf32>
      %40 = vector.multi_reduction <add>, %39, %cst_22 [1, 2] : vector<1x8x32xf32> to vector<1xf32>
      %41 = vector.shape_cast %40 : vector<1xf32> to vector<1x1x1xf32>
      %42 = vector.extract %41[0, 0, 0] : f32 from vector<1x1x1xf32>
      %cst_23 = arith.constant 0.000000e+00 : f32
      %43 = arith.addf %cst_23, %42 : f32
      %c0_24 = arith.constant 0 : index
      %c0_25 = arith.constant 0 : index
      %44 = vector.load %arg13[%c0_24, %c0_25] : memref<8x32xf32, #tpu.memory_space<vmem>>, vector<8x32xf32>
      %45 = vector.shape_cast %44 : vector<8x32xf32> to vector<1x8x32xf32>
      %cst_26 = arith.constant dense<0.000000e+00> : vector<1xf32>
      %46 = vector.multi_reduction <add>, %45, %cst_26 [1, 2] : vector<1x8x32xf32> to vector<1xf32>
      %47 = vector.shape_cast %46 : vector<1xf32> to vector<1x1x1xf32>
      %48 = vector.extract %47[0, 0, 0] : f32 from vector<1x1x1xf32>
      %49 = arith.addf %43, %48 : f32
      %c0_27 = arith.constant 0 : index
      %c0_28 = arith.constant 0 : index
      %50 = vector.load %arg14[%c0_27, %c0_28] : memref<8x32xf32, #tpu.memory_space<vmem>>, vector<8x32xf32>
      %51 = vector.shape_cast %50 : vector<8x32xf32> to vector<1x8x32xf32>
      %cst_29 = arith.constant dense<0.000000e+00> : vector<1xf32>
      %52 = vector.multi_reduction <add>, %51, %cst_29 [1, 2] : vector<1x8x32xf32> to vector<1xf32>
      %53 = vector.shape_cast %52 : vector<1xf32> to vector<1x1x1xf32>
      %54 = vector.extract %53[0, 0, 0] : f32 from vector<1x1x1xf32>
      %55 = arith.addf %49, %54 : f32
      %c0_30 = arith.constant 0 : index
      %c0_31 = arith.constant 0 : index
      %56 = vector.load %arg15[%c0_30, %c0_31] : memref<8x32xf32, #tpu.memory_space<vmem>>, vector<8x32xf32>
      %57 = vector.shape_cast %56 : vector<8x32xf32> to vector<1x8x32xf32>
      %cst_32 = arith.constant dense<0.000000e+00> : vector<1xf32>
      %58 = vector.multi_reduction <add>, %57, %cst_32 [1, 2] : vector<1x8x32xf32> to vector<1xf32>
      %59 = vector.shape_cast %58 : vector<1xf32> to vector<1x1x1xf32>
      %60 = vector.extract %59[0, 0, 0] : f32 from vector<1x1x1xf32>
      %61 = arith.addf %55, %60 : f32
      %c0_33 = arith.constant 0 : index
      %c0_34 = arith.constant 0 : index
      %62 = memref.load %arg2[%c0_33, %c0_34] : memref<1x1xf32, #tpu.memory_space<smem>>
      %cst_35 = arith.constant 5.000000e-01 : f32
      %63 = arith.mulf %62, %cst_35 : f32
      %64 = arith.mulf %63, %61 : f32
      %65 = arith.addf %37, %64 : f32
      %66 = vector.broadcast %65 : f32 to vector<1x8x128xf32>
      %c0_36 = arith.constant 0 : index
      %c0_37 = arith.constant 0 : index
      %c0_38 = arith.constant 0 : index
      %67 = vector.load %arg9[%c0_36, %c0_37, %c0_38] : memref<1x8x128xf32, #tpu.memory_space<vmem>>, vector<1x8x128xf32>
      tpu.vector_store %arg9[%c0_36, %c0_37, %c0_38], %66 {strides = array<i32>} : memref<1x8x128xf32, #tpu.memory_space<vmem>>, vector<1x8x128xf32>,
    } else {
    }
    return
  }
  func.func @transform_0(%arg0: i32, %arg1: i32) -> (i32, i32) {
    %c0_i32 = arith.constant 0 : i32
    %c0_i32_0 = arith.constant 0 : i32
    %c0_i32_1 = arith.constant 0 : i32
    return %c0_i32, %c0_i32_0 : i32, i32
  }
  func.func @transform_1(%arg0: i32, %arg1: i32) -> (i32, i32) {
    %c1_i32 = arith.constant 1 : i32
    %0 = arith.muli %arg0, %c1_i32 : i32
    %1 = arith.addi %0, %arg1 : i32
    %c0_i32 = arith.constant 0 : i32
    %2 = arith.minsi %1, %c0_i32 : i32
    %c0_i32_0 = arith.constant 0 : i32
    %c0_i32_1 = arith.constant 0 : i32
    return %2, %c0_i32_0 : i32, i32
  }
  func.func @transform_2(%arg0: i32, %arg1: i32) -> (i32, i32) {
    %c1_i32 = arith.constant 1 : i32
    %0 = arith.muli %arg0, %c1_i32 : i32
    %1 = arith.addi %0, %arg1 : i32
    %c0_i32 = arith.constant 0 : i32
    %2 = arith.minsi %1, %c0_i32 : i32
    %c0_i32_0 = arith.constant 0 : i32
    %c0_i32_1 = arith.constant 0 : i32
    return %2, %c0_i32_0 : i32, i32
  }
  func.func @transform_3(%arg0: i32, %arg1: i32) -> (i32, i32) {
    %c1_i32 = arith.constant 1 : i32
    %0 = arith.muli %arg0, %c1_i32 : i32
    %1 = arith.addi %0, %arg1 : i32
    %c0_i32 = arith.constant 0 : i32
    %2 = arith.minsi %1, %c0_i32 : i32
    %c0_i32_0 = arith.constant 0 : i32
    %c0_i32_1 = arith.constant 0 : i32
    return %2, %c0_i32_0 : i32, i32
  }
  func.func @transform_4(%arg0: i32, %arg1: i32) -> (i32, i32) {
    %c1_i32 = arith.constant 1 : i32
    %0 = arith.muli %arg0, %c1_i32 : i32
    %1 = arith.addi %0, %arg1 : i32
    %c0_i32 = arith.constant 0 : i32
    %2 = arith.minsi %1, %c0_i32 : i32
    %c0_i32_0 = arith.constant 0 : i32
    %c0_i32_1 = arith.constant 0 : i32
    return %2, %c0_i32_0 : i32, i32
  }
  func.func @transform_5(%arg0: i32, %arg1: i32) -> (i32, i32) {
    %c1_i32 = arith.constant 1 : i32
    %0 = arith.muli %arg0, %c1_i32 : i32
    %1 = arith.addi %0, %arg1 : i32
    %c0_i32 = arith.constant 0 : i32
    %2 = arith.minsi %1, %c0_i32 : i32
    %c0_i32_0 = arith.constant 0 : i32
    %c0_i32_1 = arith.constant 0 : i32
    return %2, %c0_i32_0 : i32, i32
  }
  func.func @transform_6(%arg0: i32, %arg1: i32) -> (i32, i32) {
    %c1_i32 = arith.constant 1 : i32
    %0 = arith.muli %arg0, %c1_i32 : i32
    %1 = arith.addi %0, %arg1 : i32
    %c0_i32 = arith.constant 0 : i32
    %2 = arith.minsi %1, %c0_i32 : i32
    %c0_i32_0 = arith.constant 0 : i32
    %c0_i32_1 = arith.constant 0 : i32
    return %2, %c0_i32_0 : i32, i32
  }
  func.func @transform_7(%arg0: i32, %arg1: i32) -> (i32, i32, i32) {
    %c0_i32 = arith.constant 0 : i32
    %c0_i32_0 = arith.constant 0 : i32
    %c0_i32_1 = arith.constant 0 : i32
    return %arg0, %c0_i32, %c0_i32_0 : i32, i32, i32
  }
}

</mosaic_0001>

<llo_original>
// kernel: simple_loss_pallas.1
$region0: #{simple_loss_pallas.1}
  #allocation0 [shape = 'u32[]', space=smem, size = 0x4, offset = 0x4, fixed_abs, tag = 'smem constant byte address 0x4 - core index']
  #allocation1 [shape = 'u32[72,128]{1,0:T(1,128)}', space=vmem, size = 0x9000, scoped, tag = 'internal scratch']
  #allocation2 [shape = 'f32[8,128]{1,0:T(8,128)}', space=vmem, size = 0x1000, scoped, tag = 'scratch operand']
  #allocation3 [shape = 'f32[8,1]{1,0:T(8,128)}', space=vmem, size = 0x1000, scoped, tag = 'scratch operand']
  #allocation4 [shape = 'f32[8,32]{1,0:T(8,128)}', space=vmem, size = 0x1000, scoped, tag = 'scratch operand']
  #allocation5 [shape = 'f32[8,32]{1,0:T(8,128)}', space=vmem, size = 0x1000, scoped, tag = 'scratch operand']
  #allocation6 [shape = 'f32[8,32]{1,0:T(8,128)}', space=vmem, size = 0x1000, scoped, tag = 'scratch operand']
  #allocation7 [shape = 'f32[8,32]{1,0:T(8,128)}', space=vmem, size = 0x1000, scoped, tag = 'scratch operand']
  #allocation8 [shape = 'f32[1,1]{1,0:T(1,128)S(6)}', space=smem, size = 0x200, scoped, tag = 'scoped memory for simple_loss_pallas.1']
  %s0 = inlined_call_operand.<no memory space> [shape: f32[1,1], index: 0, kind: input, shape index: {}]
  %s1 = inlined_call_operand.hbm [shape: f32[8,128], index: 1, kind: input, shape index: {}]
  %s2 = inlined_call_operand.vmem [shape: f32[8,1], index: 2, kind: input, shape index: {}]
  %s3 = inlined_call_operand.hbm [shape: f32[32,32], index: 3, kind: input, shape index: {}]
  %s4 = inlined_call_operand.hbm [shape: f32[32,32], index: 4, kind: input, shape index: {}]
  %s5 = inlined_call_operand.hbm [shape: f32[16,32], index: 5, kind: input, shape index: {}]
  %s6 = inlined_call_operand.vmem [shape: f32[16,32], index: 6, kind: input, shape index: {}]
  %s7 = inlined_call_operand.vmem [shape: f32[2,8,128], index: 7, kind: output, shape index: {}]
  %s8 = sld [smem:[#allocation0]]
  $region89: #{simple_loss_pallas.1} parent=0
    _
  %s10 = ssub.s32 1, %s8
  %s11 = scalar_select 0, %s10, %s8
  %12 = sst [smem:[#allocation8]] %s0
  $region1: #{simple_loss_pallas.1} parent=0
    #allocation9 [shape = 'u8[8192]{0}', space=vmem, size = 0x2000, scoped, tag = 'input window, operand 1']
    #allocation10 [shape = 's32[2]{0}', space=sflag, size = 0x8, scoped, tag = 'scoped memory for simple_loss_pallas.1']
    #allocation11 [shape = 'u8[32768]{0}', space=vmem, size = 0x8000, scoped, tag = 'input window, operand 3']
    #allocation12 [shape = 's32[2]{0}', space=sflag, size = 0x8, scoped, tag = 'scoped memory for simple_loss_pallas.1']
    #allocation13 [shape = 'u8[32768]{0}', space=vmem, size = 0x8000, scoped, tag = 'input window, operand 4']
    #allocation14 [shape = 'u8[16384]{0}', space=vmem, size = 0x4000, scoped, tag = 'input window, operand 5']
    #allocation15 [shape = 's32[2]{0}', space=sflag, size = 0x8, scoped, tag = 'scoped memory for simple_loss_pallas.1']
    %13 = vsyncpa [#allocation10], 0
    %s14 = scalar_lea.sflag [#allocation10], 1
    %15 = vsyncpa %s14, 0
    %16 = vsyncpa [#allocation12], 0
    %s17 = scalar_lea.sflag [#allocation12], 1
    %18 = vsyncpa %s17, 0
    %19 = vsyncpa [#allocation15], 0
    %s20 = scalar_lea.sflag [#allocation15], 1
    %21 = vsyncpa %s20, 0
    loop: start=0, step=1, limit=4
    $region2: #{simple_loss_pallas.1} parent=1 // loop_pre_header
      _
    $region3: #{simple_loss_pallas.1} parent=1 // loop_header
      %s23 = sphi 0, %s27
      %p24 = scmp.ge.s32.totalorder %s23, 4
      %s30 = sphi 0, %s42
      %s31 = sphi 0, %s38
      %s32 = sphi 0, %s30
      %s33 = sphi 0, %s31
      %s34 = sphi 0, %s32
      %s35 = sphi 0, %s33
      %s43 = sphi 0, %s43
      %s45 = sphi 0, %s43
      %s46 = sphi 0, %s45
      %s60 = sphi 0, %s46
      %s72 = sphi 0, %s74
      %s75 = sphi 0, %s72
      %s76 = sphi 0, %s75
      %s92 = sphi 0, %s76
      %s104 = sphi 0, %s106
      %s107 = sphi 0, %s104
      %s108 = sphi 0, %s107
      %s124 = sphi 0, %s108
      %s136 = sphi 0, %s138
      %s139 = sphi 0, %s136
      %s140 = sphi 0, %s139
      %s156 = sphi 0, %s140
      %s168 = sphi 0, %s170
      %s171 = sphi 0, %s168
      %s172 = sphi 0, %s171
      %s188 = sphi 0, %s172
      %s200 = sphi 0, %s202
      %s203 = sphi 0, %s200
      %s204 = sphi 0, %s203
      %s220 = sphi 0, %s204
      %s232 = sphi 0, %s234
      %s235 = sphi 0, %s232
      %s236 = sphi 0, %s235
      %s252 = sphi 0, %s236
      %s258 = sphi 0, %s260
      %s261 = sphi 0, %s258
      %s262 = sphi 0, %s261
      %s278 = sphi 0, %s262
    $region4: #{simple_loss_pallas.1} parent=1 // loop_header_branch
      %26 = sbr.rel (%p24) target = $region8
    $region5: #{simple_loss_pallas.1} parent=1 // loop_body
      %s28 = ssub.s32 %s23, 1
      %s29 = ssub.s32 %s23, 2
      %s36 = sadd.s32 1, %s31
      %p37 = scmp.ge.s32.totalorder %s36, 1
      %s38 = scalar_select %p37, 0, %s36
      %s39 = sadd.s32 1, %s30
      %s40 = scalar_select %p37, %s39, %s30
      %p41 = scmp.ge.s32.totalorder %s40, 2
      %s42 = scalar_select %p41, 0, %s40
      %s44 = sadd.s32 %s43, 1
      %p47 = scmp.eq.s32.totalorder %s23, 1
      %p48 = scmp.ne.s32.totalorder %s43, %s45
      %p49 = scmp.eq.s32.totalorder %s23, 0
      %p50 = por %p48, %p49
      %p51 = scmp.ne.s32.totalorder %s43, %s45
      %p52 = scmp.eq.s32.totalorder %s28, 1
      %p53 = por %p51, %p52
      %p54 = scmp.ne.s32.totalorder %s45, %s46
      %p55 = scmp.eq.s32.totalorder %s28, 0
      %p56 = por %p54, %p55
      %p57 = scmp.ne.s32.totalorder %s45, %s46
      %p58 = scmp.eq.s32.totalorder %s29, 1
      %p59 = por %p57, %p58
      %p61 = scmp.ne.s32.totalorder %s46, %s60
      %p62 = scmp.eq.s32.totalorder %s29, 0
      %p63 = por %p61, %p62
      %s64 = sadd.s32 %s30, %s31
      %p65 = scmp.lt.s32.totalorder %s64, 0
      %s66 = scalar_select %p65, %s64, 0
      %s67 = sadd.s32 %s42, %s38
      %p68 = scmp.lt.s32.totalorder %s67, 0
      %s69 = scalar_select %p68, %s67, 0
      %s70 = ssub.s32 %s66, %s69
      %p71 = scmp.eq.s32.totalorder %s70, 0
      %s73 = sadd.s32 %s72, 1
      %s74 = scalar_select %p71, %s72, %s73
      %p77 = pneg %p71
      %p78 = scmp.eq.s32.totalorder %s23, 1
      %p79 = por %p77, %p78
      %p80 = scmp.ne.s32.totalorder %s72, %s75
      %p81 = scmp.eq.s32.totalorder %s23, 0
      %p82 = por %p80, %p81
      %p83 = scmp.ne.s32.totalorder %s72, %s75
      %p84 = scmp.eq.s32.totalorder %s28, 1
      %p85 = por %p83, %p84
      %p86 = scmp.ne.s32.totalorder %s75, %s76
      %p87 = scmp.eq.s32.totalorder %s28, 0
      %p88 = por %p86, %p87
      %p89 = scmp.ne.s32.totalorder %s75, %s76
      %p90 = scmp.eq.s32.totalorder %s29, 1
      %p91 = por %p89, %p90
      %p93 = scmp.ne.s32.totalorder %s76, %s92
      %p94 = scmp.eq.s32.totalorder %s29, 0
      %p95 = por %p93, %p94
      %s96 = sadd.s32 %s30, %s31
      %p97 = scmp.lt.s32.totalorder %s96, 0
      %s98 = scalar_select %p97, %s96, 0
      %s99 = sadd.s32 %s42, %s38
      %p100 = scmp.lt.s32.totalorder %s99, 0
      %s101 = scalar_select %p100, %s99, 0
      %s102 = ssub.s32 %s98, %s101
      %p103 = scmp.eq.s32.totalorder %s102, 0
      %s105 = sadd.s32 %s104, 1
      %s106 = scalar_select %p103, %s104, %s105
      %p109 = pneg %p103
      %p110 = scmp.eq.s32.totalorder %s23, 1
      %p111 = por %p109, %p110
      %p112 = scmp.ne.s32.totalorder %s104, %s107
      %p113 = scmp.eq.s32.totalorder %s23, 0
      %p114 = por %p112, %p113
      %p115 = scmp.ne.s32.totalorder %s104, %s107
      %p116 = scmp.eq.s32.totalorder %s28, 1
      %p117 = por %p115, %p116
      %p118 = scmp.ne.s32.totalorder %s107, %s108
      %p119 = scmp.eq.s32.totalorder %s28, 0
      %p120 = por %p118, %p119
      %p121 = scmp.ne.s32.totalorder %s107, %s108
      %p122 = scmp.eq.s32.totalorder %s29, 1
      %p123 = por %p121, %p122
      %p125 = scmp.ne.s32.totalorder %s108, %s124
      %p126 = scmp.eq.s32.totalorder %s29, 0
      %p127 = por %p125, %p126
      %s128 = sadd.s32 %s30, %s31
      %p129 = scmp.lt.s32.totalorder %s128, 0
      %s130 = scalar_select %p129, %s128, 0
      %s131 = sadd.s32 %s42, %s38
      %p132 = scmp.lt.s32.totalorder %s131, 0
      %s133 = scalar_select %p132, %s131, 0
      %s134 = ssub.s32 %s130, %s133
      %p135 = scmp.eq.s32.totalorder %s134, 0
      %s137 = sadd.s32 %s136, 1
      %s138 = scalar_select %p135, %s136, %s137
      %p141 = pneg %p135
      %p142 = scmp.eq.s32.totalorder %s23, 1
      %p143 = por %p141, %p142
      %p144 = scmp.ne.s32.totalorder %s136, %s139
      %p145 = scmp.eq.s32.totalorder %s23, 0
      %p146 = por %p144, %p145
      %p147 = scmp.ne.s32.totalorder %s136, %s139
      %p148 = scmp.eq.s32.totalorder %s28, 1
      %p149 = por %p147, %p148
      %p150 = scmp.ne.s32.totalorder %s139, %s140
      %p151 = scmp.eq.s32.totalorder %s28, 0
      %p152 = por %p150, %p151
      %p153 = scmp.ne.s32.totalorder %s139, %s140
      %p154 = scmp.eq.s32.totalorder %s29, 1
      %p155 = por %p153, %p154
      %p157 = scmp.ne.s32.totalorder %s140, %s156
      %p158 = scmp.eq.s32.totalorder %s29, 0
      %p159 = por %p157, %p158
      %s160 = sadd.s32 %s30, %s31
      %p161 = scmp.lt.s32.totalorder %s160, 0
      %s162 = scalar_select %p161, %s160, 0
      %s163 = sadd.s32 %s42, %s38
      %p164 = scmp.lt.s32.totalorder %s163, 0
      %s165 = scalar_select %p164, %s163, 0
      %s166 = ssub.s32 %s162, %s165
      %p167 = scmp.eq.s32.totalorder %s166, 0
      %s169 = sadd.s32 %s168, 1
      %s170 = scalar_select %p167, %s168, %s169
      %p173 = pneg %p167
      %p174 = scmp.eq.s32.totalorder %s23, 1
      %p175 = por %p173, %p174
      %p176 = scmp.ne.s32.totalorder %s168, %s171
      %p177 = scmp.eq.s32.totalorder %s23, 0
      %p178 = por %p176, %p177
      %p179 = scmp.ne.s32.totalorder %s168, %s171
      %p180 = scmp.eq.s32.totalorder %s28, 1
      %p181 = por %p179, %p180
      %p182 = scmp.ne.s32.totalorder %s171, %s172
      %p183 = scmp.eq.s32.totalorder %s28, 0
      %p184 = por %p182, %p183
      %p185 = scmp.ne.s32.totalorder %s171, %s172
      %p186 = scmp.eq.s32.totalorder %s29, 1
      %p187 = por %p185, %p186
      %p189 = scmp.ne.s32.totalorder %s172, %s188
      %p190 = scmp.eq.s32.totalorder %s29, 0
      %p191 = por %p189, %p190
      %s192 = sadd.s32 %s30, %s31
      %p193 = scmp.lt.s32.totalorder %s192, 0
      %s194 = scalar_select %p193, %s192, 0
      %s195 = sadd.s32 %s42, %s38
      %p196 = scmp.lt.s32.totalorder %s195, 0
      %s197 = scalar_select %p196, %s195, 0
      %s198 = ssub.s32 %s194, %s197
      %p199 = scmp.eq.s32.totalorder %s198, 0
      %s201 = sadd.s32 %s200, 1
      %s202 = scalar_select %p199, %s200, %s201
      %p205 = pneg %p199
      %p206 = scmp.eq.s32.totalorder %s23, 1
      %p207 = por %p205, %p206
      %p208 = scmp.ne.s32.totalorder %s200, %s203
      %p209 = scmp.eq.s32.totalorder %s23, 0
      %p210 = por %p208, %p209
      %p211 = scmp.ne.s32.totalorder %s200, %s203
      %p212 = scmp.eq.s32.totalorder %s28, 1
      %p213 = por %p211, %p212
      %p214 = scmp.ne.s32.totalorder %s203, %s204
      %p215 = scmp.eq.s32.totalorder %s28, 0
      %p216 = por %p214, %p215
      %p217 = scmp.ne.s32.totalorder %s203, %s204
      %p218 = scmp.eq.s32.totalorder %s29, 1
      %p219 = por %p217, %p218
      %p221 = scmp.ne.s32.totalorder %s204, %s220
      %p222 = scmp.eq.s32.totalorder %s29, 0
      %p223 = por %p221, %p222
      %s224 = sadd.s32 %s30, %s31
      %p225 = scmp.lt.s32.totalorder %s224, 0
      %s226 = scalar_select %p225, %s224, 0
      %s227 = sadd.s32 %s42, %s38
      %p228 = scmp.lt.s32.totalorder %s227, 0
      %s229 = scalar_select %p228, %s227, 0
      %s230 = ssub.s32 %s226, %s229
      %p231 = scmp.eq.s32.totalorder %s230, 0
      %s233 = sadd.s32 %s232, 1
      %s234 = scalar_select %p231, %s232, %s233
      %p237 = pneg %p231
      %p238 = scmp.eq.s32.totalorder %s23, 1
      %p239 = por %p237, %p238
      %p240 = scmp.ne.s32.totalorder %s232, %s235
      %p241 = scmp.eq.s32.totalorder %s23, 0
      %p242 = por %p240, %p241
      %p243 = scmp.ne.s32.totalorder %s232, %s235
      %p244 = scmp.eq.s32.totalorder %s28, 1
      %p245 = por %p243, %p244
      %p246 = scmp.ne.s32.totalorder %s235, %s236
      %p247 = scmp.eq.s32.totalorder %s28, 0
      %p248 = por %p246, %p247
      %p249 = scmp.ne.s32.totalorder %s235, %s236
      %p250 = scmp.eq.s32.totalorder %s29, 1
      %p251 = por %p249, %p250
      %p253 = scmp.ne.s32.totalorder %s236, %s252
      %p254 = scmp.eq.s32.totalorder %s29, 0
      %p255 = por %p253, %p254
      %s256 = ssub.s32 %s30, %s42
      %p257 = scmp.eq.s32.totalorder %s256, 0
      %s259 = sadd.s32 %s258, 1
      %s260 = scalar_select %p257, %s258, %s259
      %p263 = pneg %p257
      %p264 = scmp.eq.s32.totalorder %s23, 1
      %p265 = por %p263, %p264
      %p266 = scmp.ne.s32.totalorder %s258, %s261
      %p267 = scmp.eq.s32.totalorder %s23, 0
      %p268 = por %p266, %p267
      %p269 = scmp.ne.s32.totalorder %s258, %s261
      %p270 = scmp.eq.s32.totalorder %s28, 1
      %p271 = por %p269, %p270
      %p272 = scmp.ne.s32.totalorder %s261, %s262
      %p273 = scmp.eq.s32.totalorder %s28, 0
      %p274 = por %p272, %p273
      %p275 = scmp.ne.s32.totalorder %s261, %s262
      %p276 = scmp.eq.s32.totalorder %s29, 1
      %p277 = por %p275, %p276
      %p279 = scmp.ne.s32.totalorder %s262, %s278
      %p280 = scmp.eq.s32.totalorder %s29, 0
      %p281 = por %p279, %p280
      %p282 = scmp.le.s32.totalorder 1, %s23
      %p283 = scmp.lt.s32.totalorder %s23, 3
      %p284 = pnand %p282, %p283
      %p285 = pneg %p284
      // Predicated region
      $region9: #{simple_loss_pallas.1} parent=5 // pred_check
        _
      $region10: #{simple_loss_pallas.1} parent=5 // pred_check_branch
        %287 = sbr.rel (%p284) target = $region12
      $region11: #{simple_loss_pallas.1} parent=5 // pred_region
        %s288 = ssub.s32 %s23, 1
        // Predicated region
        $region13: #{simple_loss_pallas.1} parent=11 // pred_check
          %p289 = pneg %p56
        $region14: #{simple_loss_pallas.1} parent=11 // pred_check_branch
          %291 = sbr.rel (%p289) target = $region16
        $region15: #{simple_loss_pallas.1} parent=11 // pred_region
          _
        $region16: #{simple_loss_pallas.1} parent=11 // pred_fallthru
          _
      $region12: #{simple_loss_pallas.1} parent=5 // pred_fallthru
        _
      %p292 = scmp.lt.s32.totalorder %s23, 2
      // Predicated region
      $region17: #{simple_loss_pallas.1} parent=5 // pred_check
        %p293 = pneg %p292
      $region18: #{simple_loss_pallas.1} parent=5 // pred_check_branch
        %295 = sbr.rel (%p293) target = $region20
      $region19: #{simple_loss_pallas.1} parent=5 // pred_region
        // Predicated region
        $region21: #{simple_loss_pallas.1} parent=19 // pred_check
          %p296 = pneg %p82
        $region22: #{simple_loss_pallas.1} parent=19 // pred_check_branch
          %298 = sbr.rel (%p296) target = $region24
        $region23: #{simple_loss_pallas.1} parent=19 // pred_region
          %s299 = sand.u32 %s72, 1
          %s300 = scalar_lea.sflag [#allocation10], %s299
          %s301 = sand.u32 %s72, 1
          %s302 = smul.addr %s301, 8
          %s303 = scalar_lea.vmem [#allocation9], %s302
          %s304 = sadd.s32 %s30, %s31
          %p305 = scmp.lt.s32.totalorder %s304, 0
          %s306 = scalar_select %p305, %s304, 0
          %308 = vsyncadd %s300, 0
          %s309 = smul.addr %s306, 8
          %s310 = scalar_lea.hbm %s1, %s309
          %s312 = sshll.u32 %s310, 4
          %s313 = int_to_ptr.hbm [resolvable:$true] %s312
          %s314 = sshll.u32 %s303, 4
          %s315 = int_to_ptr.vmem [resolvable:$true] %s314
          %317 = dma.hbm_to_vmem [thread:$0]  %s313, 128, %s315, %s300
        $region24: #{simple_loss_pallas.1} parent=19 // pred_fallthru
          _
        // Predicated region
        $region25: #{simple_loss_pallas.1} parent=19 // pred_check
          %p318 = pneg %p114
        $region26: #{simple_loss_pallas.1} parent=19 // pred_check_branch
          %320 = sbr.rel (%p318) target = $region28
        $region27: #{simple_loss_pallas.1} parent=19 // pred_region
          %s321 = sadd.s32 %s30, %s31
          %p322 = scmp.lt.s32.totalorder %s321, 0
          %s323 = scalar_select %p322, %s321, 0
          %p324 = scmp.lt.s32.totalorder %s323, 0
          %s325 = scalar_select %p324, %s323, 0
          %s326 = smul.addr %s325, 8
          %s327 = scalar_lea.vmem %s2, %s326
          %s328 = sadd.s32 %s30, %s31
          %p329 = scmp.lt.s32.totalorder %s328, 0
          %s330 = scalar_select %p329, %s328, 0
        $region28: #{simple_loss_pallas.1} parent=19 // pred_fallthru
          _
        // Predicated region
        $region29: #{simple_loss_pallas.1} parent=19 // pred_check
          %p331 = pneg %p146
        $region30: #{simple_loss_pallas.1} parent=19 // pred_check_branch
          %333 = sbr.rel (%p331) target = $region32
        $region31: #{simple_loss_pallas.1} parent=19 // pred_region
          %s334 = sand.u32 %s23, 1
          %s335 = scalar_lea.sflag [#allocation12], %s334
          %s336 = sand.u32 %s136, 1
          %s337 = smul.addr %s336, 32
          %s338 = scalar_lea.vmem [#allocation11], %s337
          %s339 = sadd.s32 %s30, %s31
          %p340 = scmp.lt.s32.totalorder %s339, 0
          %s341 = scalar_select %p340, %s339, 0
          %s342 = smul.u32 4, %s341
          %344 = vsyncadd %s335, 0
          %s345 = smul.addr %s342, 8
          %s346 = scalar_lea.hbm %s3, %s345
          %s347 = sshll.u32 %s346, 4
          %s348 = int_to_ptr.hbm [resolvable:$true] %s347
          %s349 = sshll.u32 %s338, 4
          %s350 = int_to_ptr.vmem [resolvable:$true] %s349
          %355 = dma.hbm_to_vmem [thread:$0]  %s348, 512, %s350, %s335, 128, 128, 8
        $region32: #{simple_loss_pallas.1} parent=19 // pred_fallthru
          _
        // Predicated region
        $region33: #{simple_loss_pallas.1} parent=19 // pred_check
          %p356 = pneg %p178
        $region34: #{simple_loss_pallas.1} parent=19 // pred_check_branch
          %358 = sbr.rel (%p356) target = $region36
        $region35: #{simple_loss_pallas.1} parent=19 // pred_region
          %s359 = sand.u32 %s23, 1
          %s360 = scalar_lea.sflag [#allocation12], %s359
          %s361 = sand.u32 %s168, 1
          %s362 = smul.addr %s361, 32
          %s363 = scalar_lea.vmem [#allocation13], %s362
          %s364 = sadd.s32 %s30, %s31
          %p365 = scmp.lt.s32.totalorder %s364, 0
          %s366 = scalar_select %p365, %s364, 0
          %s367 = smul.u32 4, %s366
          %369 = vsyncadd %s360, 0
          %s370 = smul.addr %s367, 8
          %s371 = scalar_lea.hbm %s4, %s370
          %s372 = sshll.u32 %s371, 4
          %s373 = int_to_ptr.hbm [resolvable:$true] %s372
          %s374 = sshll.u32 %s363, 4
          %s375 = int_to_ptr.vmem [resolvable:$true] %s374
          %380 = dma.hbm_to_vmem [thread:$0]  %s373, 512, %s375, %s360, 128, 128, 8
        $region36: #{simple_loss_pallas.1} parent=19 // pred_fallthru
          _
        // Predicated region
        $region37: #{simple_loss_pallas.1} parent=19 // pred_check
          %p381 = pneg %p210
        $region38: #{simple_loss_pallas.1} parent=19 // pred_check_branch
          %383 = sbr.rel (%p381) target = $region40
        $region39: #{simple_loss_pallas.1} parent=19 // pred_region
          %s384 = sand.u32 %s200, 1
          %s385 = scalar_lea.sflag [#allocation15], %s384
          %s386 = sand.u32 %s200, 1
          %s387 = smul.addr %s386, 16
          %s388 = scalar_lea.vmem [#allocation14], %s387
          %s389 = sadd.s32 %s30, %s31
          %p390 = scmp.lt.s32.totalorder %s389, 0
          %s391 = scalar_select %p390, %s389, 0
          %s392 = smul.u32 2, %s391
          %394 = vsyncadd %s385, 0
          %s395 = smul.addr %s392, 8
          %s396 = scalar_lea.hbm %s5, %s395
          %s397 = sshll.u32 %s396, 4
          %s398 = int_to_ptr.hbm [resolvable:$true] %s397
          %s399 = sshll.u32 %s388, 4
          %s400 = int_to_ptr.vmem [resolvable:$true] %s399
          %405 = dma.hbm_to_vmem [thread:$0]  %s398, 256, %s400, %s385, 128, 128, 8
        $region40: #{simple_loss_pallas.1} parent=19 // pred_fallthru
          _
        // Predicated region
        $region41: #{simple_loss_pallas.1} parent=19 // pred_check
          %p406 = pneg %p242
        $region42: #{simple_loss_pallas.1} parent=19 // pred_check_branch
          %408 = sbr.rel (%p406) target = $region44
        $region43: #{simple_loss_pallas.1} parent=19 // pred_region
          %s409 = sadd.s32 %s30, %s31
          %p410 = scmp.lt.s32.totalorder %s409, 0
          %s411 = scalar_select %p410, %s409, 0
          %s412 = smul.u32 2, %s411
          %p413 = scmp.lt.s32.totalorder %s412, 1
          %s414 = scalar_select %p413, %s412, 1
          %s415 = smul.addr %s414, 8
          %s416 = scalar_lea.vmem %s6, %s415
          %s417 = sadd.s32 %s30, %s31
          %p418 = scmp.lt.s32.totalorder %s417, 0
          %s419 = scalar_select %p418, %s417, 0
          %s420 = smul.u32 2, %s419
        $region44: #{simple_loss_pallas.1} parent=19 // pred_fallthru
          _
      $region20: #{simple_loss_pallas.1} parent=5 // pred_fallthru
        _
      %p421 = scmp.le.s32.totalorder 1, %s23
      %p422 = scmp.lt.s32.totalorder %s23, 3
      %p423 = pnand %p421, %p422
      %p424 = pneg %p423
      // Predicated region
      $region45: #{simple_loss_pallas.1} parent=5 // pred_check
        _
      $region46: #{simple_loss_pallas.1} parent=5 // pred_check_branch
        %426 = sbr.rel (%p423) target = $region48
      $region47: #{simple_loss_pallas.1} parent=5 // pred_region
        %s427 = ssub.s32 %s23, 1
        %s428 = sand.u32 %s75, 1
        %s429 = scalar_lea.sflag [#allocation10], %s428
        %s430 = sand.u32 %s75, 1
        %s431 = smul.addr %s430, 8
        %s432 = scalar_lea.vmem [#allocation9], %s431
        // Predicated region
        $region49: #{simple_loss_pallas.1} parent=47 // pred_check
          %p433 = pneg %p88
        $region50: #{simple_loss_pallas.1} parent=47 // pred_check_branch
          %435 = sbr.rel (%p433) target = $region52
        $region51: #{simple_loss_pallas.1} parent=47 // pred_region
          %437 = dma.done %s429, 128
        $region52: #{simple_loss_pallas.1} parent=47 // pred_fallthru
          _
        %s438 = sand.u32 %s28, 1
        %s439 = scalar_lea.sflag [#allocation12], %s438
        %s440 = sand.u32 %s139, 1
        %s441 = smul.addr %s440, 32
        %s442 = scalar_lea.vmem [#allocation11], %s441
        // Predicated region
        $region53: #{simple_loss_pallas.1} parent=47 // pred_check
          %p443 = pneg %p152
        $region54: #{simple_loss_pallas.1} parent=47 // pred_check_branch
          %445 = sbr.rel (%p443) target = $region56
        $region55: #{simple_loss_pallas.1} parent=47 // pred_region
          %447 = dma.done %s439, 512
        $region56: #{simple_loss_pallas.1} parent=47 // pred_fallthru
          _
        %s448 = sand.u32 %s28, 1
        %s449 = scalar_lea.sflag [#allocation12], %s448
        %s450 = sand.u32 %s171, 1
        %s451 = smul.addr %s450, 32
        %s452 = scalar_lea.vmem [#allocation13], %s451
        // Predicated region
        $region57: #{simple_loss_pallas.1} parent=47 // pred_check
          %p453 = pneg %p184
        $region58: #{simple_loss_pallas.1} parent=47 // pred_check_branch
          %455 = sbr.rel (%p453) target = $region60
        $region59: #{simple_loss_pallas.1} parent=47 // pred_region
          %457 = dma.done %s449, 512
        $region60: #{simple_loss_pallas.1} parent=47 // pred_fallthru
          _
        %s458 = sand.u32 %s203, 1
        %s459 = scalar_lea.sflag [#allocation15], %s458
        %s460 = sand.u32 %s203, 1
        %s461 = smul.addr %s460, 16
        %s462 = scalar_lea.vmem [#allocation14], %s461
        // Predicated region
        $region61: #{simple_loss_pallas.1} parent=47 // pred_check
          %p463 = pneg %p216
        $region62: #{simple_loss_pallas.1} parent=47 // pred_check_branch
          %465 = sbr.rel (%p463) target = $region64
        $region63: #{simple_loss_pallas.1} parent=47 // pred_region
          %467 = dma.done %s459, 256
        $region64: #{simple_loss_pallas.1} parent=47 // pred_fallthru
          _
        %p468 = pneg %p56
        %p469 = pneg %p53
        %s470 = sand.u32 %s75, 1
        %s471 = scalar_lea.sflag [#allocation10], %s470
        %s472 = sand.u32 %s75, 1
        %s473 = smul.addr %s472, 8
        %s474 = scalar_lea.vmem [#allocation9], %s473
        %p475 = pneg %p88
        %p476 = pneg %p85
        %s477 = sadd.s32 %s32, %s33
        %p478 = scmp.lt.s32.totalorder %s477, 0
        %s479 = scalar_select %p478, %s477, 0
        %p480 = scmp.lt.s32.totalorder %s479, 0
        %s481 = scalar_select %p480, %s479, 0
        %s482 = smul.addr %s481, 8
        %s483 = scalar_lea.vmem %s2, %s482
        %p484 = pneg %p120
        %p485 = pneg %p117
        %s486 = sand.u32 %s28, 1
        %s487 = scalar_lea.sflag [#allocation12], %s486
        %s488 = sand.u32 %s139, 1
        %s489 = smul.addr %s488, 32
        %s490 = scalar_lea.vmem [#allocation11], %s489
        %p491 = pneg %p152
        %p492 = pneg %p149
        %s493 = sand.u32 %s28, 1
        %s494 = scalar_lea.sflag [#allocation12], %s493
        %s495 = sand.u32 %s171, 1
        %s496 = smul.addr %s495, 32
        %s497 = scalar_lea.vmem [#allocation13], %s496
        %p498 = pneg %p184
        %p499 = pneg %p181
        %s500 = sand.u32 %s203, 1
        %s501 = scalar_lea.sflag [#allocation15], %s500
        %s502 = sand.u32 %s203, 1
        %s503 = smul.addr %s502, 16
        %s504 = scalar_lea.vmem [#allocation14], %s503
        %p505 = pneg %p216
        %p506 = pneg %p213
        %s507 = sadd.s32 %s32, %s33
        %p508 = scmp.lt.s32.totalorder %s507, 0
        %s509 = scalar_select %p508, %s507, 0
        %s510 = smul.u32 2, %s509
        %p511 = scmp.lt.s32.totalorder %s510, 1
        %s512 = scalar_select %p511, %s510, 1
        %s513 = smul.addr %s512, 8
        %s514 = scalar_lea.vmem %s6, %s513
        %p515 = pneg %p248
        %p516 = pneg %p245
        %p517 = pneg %p274
        %p518 = pneg %p271
        %p519 = scmp.lt.s32.totalorder %s32, 1
        %s520 = scalar_select %p519, %s32, 1
        %s521 = smul.addr %s520, 8
        %s522 = scalar_lea.vmem %s7, %s521
        %s523 = sadd.s32 %s32, %s33
        %p524 = scmp.lt.s32.totalorder %s523, 0
        %s525 = scalar_select %p524, %s523, 0
        %s526 = sadd.s32 %s32, %s33
        %p527 = scmp.lt.s32.totalorder %s526, 0
        %s528 = scalar_select %p527, %s526, 0
        %p529 = scmp.lt.s32.totalorder %s528, 0
        %s530 = scalar_select %p529, %s528, 0
        %s531 = smul.addr %s530, 8
        %s532 = scalar_lea.vmem %s2, %s531
        %s533 = sadd.s32 %s32, %s33
        %p534 = scmp.lt.s32.totalorder %s533, 0
        %s535 = scalar_select %p534, %s533, 0
        %s536 = sadd.s32 %s32, %s33
        %p537 = scmp.lt.s32.totalorder %s536, 0
        %s538 = scalar_select %p537, %s536, 0
        %s539 = smul.u32 4, %s538
        %s540 = sadd.s32 %s32, %s33
        %p541 = scmp.lt.s32.totalorder %s540, 0
        %s542 = scalar_select %p541, %s540, 0
        %s543 = smul.u32 4, %s542
        %s544 = sadd.s32 %s32, %s33
        %p545 = scmp.lt.s32.totalorder %s544, 0
        %s546 = scalar_select %p545, %s544, 0
        %s547 = smul.u32 2, %s546
        %s548 = sadd.s32 %s32, %s33
        %p549 = scmp.lt.s32.totalorder %s548, 0
        %s550 = scalar_select %p549, %s548, 0
        %s551 = smul.u32 2, %s550
        %p552 = scmp.lt.s32.totalorder %s551, 1
        %s553 = scalar_select %p552, %s551, 1
        %s554 = smul.addr %s553, 8
        %s555 = scalar_lea.vmem %s6, %s554
        %s556 = sadd.s32 %s32, %s33
        %p557 = scmp.lt.s32.totalorder %s556, 0
        %s558 = scalar_select %p557, %s556, 0
        %s559 = smul.u32 2, %s558
        %p560 = scmp.lt.s32.totalorder %s32, 1
        %s561 = scalar_select %p560, %s32, 1
        %s562 = smul.addr %s561, 8
        %s563 = scalar_lea.vmem %s7, %s562
        %s564 = sadd.s32 %s32, %s33
        %p565 = scmp.eq.s32.totalorder %s33, 0
        // Predicated region
        $region65: #{simple_loss_pallas.1} parent=47 // pred_check
          %p566 = pneg %p565
        $region66: #{simple_loss_pallas.1} parent=47 // pred_check_branch
          %568 = sbr.rel (%p566) target = $region68
        $region67: #{simple_loss_pallas.1} parent=47 // pred_region
          %569 = vst [vmem:[#allocation2] sm:$0xff] 0.0
          %vm570 = vcmask 7168
          %571 = vst.msk [vmem:[#allocation3] sm:$0xff] %vm570, 0.0
          %vm572 = vcmask 261120
          %573 = vst.msk [vmem:[#allocation4] sm:$0xff] %vm572, 0.0
          %574 = vst.msk [vmem:[#allocation5] sm:$0xff] %vm572, 0.0
          %575 = vst.msk [vmem:[#allocation6] sm:$0xff] %vm572, 0.0
          %576 = vst.msk [vmem:[#allocation7] sm:$0xff] %vm572, 0.0
        $region68: #{simple_loss_pallas.1} parent=47 // pred_fallthru
          _
        %p577 = scmp.lt.s32.totalorder %s564, 1
        // Predicated region
        $region69: #{simple_loss_pallas.1} parent=47 // pred_check
          %p578 = pneg %p577
        $region70: #{simple_loss_pallas.1} parent=47 // pred_check_branch
          %580 = sbr.rel (%p578) target = $region72
        $region71: #{simple_loss_pallas.1} parent=47 // pred_region
          %v581 = vld [vmem:[%s432] sm:$0xff]
          %v582 = vmax.f32 %v581, 0.0
          %v583 = vand.u32 2147483647, %v581
          %v584 = vsub.f32 0.0, %v583
          %v585 = vmul.f32 %v584, 1.442695
          %v586 = vpow.pop %v585
          %v587 = vadd.f32 %v586, 1.0
          %v588 = vlog2.pop %v587
          %v589 = vmul.f32 %v588, 0.6931472
          %v590 = vmul.f32 -0.5, %v586
          %v591 = vadd.f32 %v590, 1.0
          %v592 = vmul.f32 %v591, %v586
          %v593 = vand.u32 2147483647, %v586
          %vm594 = vcmp.lt.f32.partialorder %v593, 0.0004427343
          %v595 = vsel %vm594, %v592, %v589
          %v596 = vadd.f32 %v582, %v595
          %v597 = vld [vmem:[#allocation2] sm:$0xff]
          %v598 = vadd.f32 %v596, 0.0
          %v599 = vadd.f32 %v597, %v598
          %600 = vst [vmem:[#allocation2] sm:$0xff] %v599
          %v601 = vld [vmem:[%s532] sm:$0xff]
          %v602 = vsub.f32 0.0, %v601
          %v603 = vmax.f32 %v602, 0.0
          %v604 = vand.u32 2147483647, %v602
          %v605 = vsub.f32 0.0, %v604
          %v606 = vmul.f32 %v605, 1.442695
          %v607 = vpow.pop %v606
          %v608 = vadd.f32 %v607, 1.0
          %v609 = vlog2.pop %v608
          %v610 = vmul.f32 %v609, 0.6931472
          %v611 = vmul.f32 -0.5, %v607
          %v612 = vadd.f32 %v611, 1.0
          %v613 = vmul.f32 %v612, %v607
          %v614 = vand.u32 2147483647, %v607
          %vm615 = vcmp.lt.f32.partialorder %v614, 0.0004427343
          %v616 = vsel %vm615, %v613, %v610
          %v617 = vadd.f32 %v603, %v616
          %v618 = vld [vmem:[#allocation3] sm:$0xff]
          %v619 = vadd.f32 %v617, 0.0
          %v620 = vadd.f32 %v618, %v619
          %vm621 = vcmask 7168
          %622 = vst.msk [vmem:[#allocation3] sm:$0xff] %vm621, %v620
          %v623 = vld [vmem:[%s442] sm:$0xff]
          %v624 = vld [vmem:[%s442 + $0x8] sm:$0xff]
          %v625 = vld [vmem:[%s442 + $0x10] sm:$0xff]
          %v626 = vld [vmem:[%s442 + $0x18] sm:$0xff]
          %v627 = vmul.f32 %v623, %v623
          %v628 = vmul.f32 %v624, %v624
          %v629 = vmul.f32 %v625, %v625
          %v630 = vmul.f32 %v626, %v626
          %v631 = vld [vmem:[#allocation4] sm:$0xff]
          %vm632 = vcmask 261120
          %v633 = vsel %vm632, %v627, 0.0
          %v634 = vsel %vm632, %v628, 0.0
          %v635 = vadd.f32 %v633, %v634
          %v636 = vsel %vm632, %v629, 0.0
          %v637 = vadd.f32 %v635, %v636
          %v638 = vsel %vm632, %v630, 0.0
          %v639 = vadd.f32 %v637, %v638
          %v640 = vadd.f32 %v631, %v639
          %641 = vst.msk [vmem:[#allocation4] sm:$0xff] %vm632, %v640
          %v642 = vld [vmem:[%s452] sm:$0xff]
          %v643 = vld [vmem:[%s452 + $0x8] sm:$0xff]
          %v644 = vld [vmem:[%s452 + $0x10] sm:$0xff]
          %v645 = vld [vmem:[%s452 + $0x18] sm:$0xff]
          %v646 = vmul.f32 %v642, %v642
          %v647 = vmul.f32 %v643, %v643
          %v648 = vmul.f32 %v644, %v644
          %v649 = vmul.f32 %v645, %v645
          %v650 = vld [vmem:[#allocation5] sm:$0xff]
          %v651 = vsel %vm632, %v646, 0.0
          %v652 = vsel %vm632, %v647, 0.0
          %v653 = vadd.f32 %v651, %v652
          %v654 = vsel %vm632, %v648, 0.0
          %v655 = vadd.f32 %v653, %v654
          %v656 = vsel %vm632, %v649, 0.0
          %v657 = vadd.f32 %v655, %v656
          %v658 = vadd.f32 %v650, %v657
          %659 = vst.msk [vmem:[#allocation5] sm:$0xff] %vm632, %v658
          %v660 = vld [vmem:[%s462] sm:$0xff]
          %v661 = vld [vmem:[%s462 + $0x8] sm:$0xff]
          %v662 = vmul.f32 %v660, %v660
          %v663 = vmul.f32 %v661, %v661
          %v664 = vld [vmem:[#allocation6] sm:$0xff]
          %v665 = vsel %vm632, %v662, 0.0
          %v666 = vsel %vm632, %v663, 0.0
          %v667 = vadd.f32 %v665, %v666
          %v668 = vadd.f32 %v664, %v667
          %669 = vst.msk [vmem:[#allocation6] sm:$0xff] %vm632, %v668
          %v670 = vld [vmem:[%s555] sm:$0xff]
          %v671 = vld [vmem:[%s555 + $0x8] sm:$0xff]
          %v672 = vmul.f32 %v670, %v670
          %v673 = vmul.f32 %v671, %v671
          %v674 = vld [vmem:[#allocation7] sm:$0xff]
          %v675 = vsel %vm632, %v672, 0.0
          %v676 = vsel %vm632, %v673, 0.0
          %v677 = vadd.f32 %v675, %v676
          %v678 = vadd.f32 %v674, %v677
          %679 = vst.msk [vmem:[#allocation7] sm:$0xff] %vm632, %v678
        $region72: #{simple_loss_pallas.1} parent=47 // pred_fallthru
          _
        // Predicated region
        $region73: #{simple_loss_pallas.1} parent=47 // pred_check
          %p680 = pneg %p565
        $region74: #{simple_loss_pallas.1} parent=47 // pred_check_branch
          %682 = sbr.rel (%p680) target = $region76
        $region75: #{simple_loss_pallas.1} parent=47 // pred_region
          %v683 = vld [vmem:[#allocation2] sm:$0xff]
          %684 = vadd.xlane.f32.xlu0 %v683
          %v685 = vpop.xlane.xlu0 %684
          %v686 = vrot.slane %v685, 4
          %v687 = vadd.f32 %v685, %v686
          %v688 = vrot.slane %v687, 2
          %v689 = vadd.f32 %v687, %v688
          %v690 = vrot.slane %v689, 1
          %v691 = vadd.f32 %v689, %v690
          %s692 = vtos %v691
          %s693 = sadd.f32 %s692, 0.0
          %v694 = vld [vmem:[#allocation3] sm:$0xff]
          %vm695 = vcmask 7168
          %v696 = vsel %vm695, %v694, 0.0
          %697 = vadd.xlane.f32.xlu0 %v696
          %v698 = vpop.xlane.xlu0 %697
          %v699 = vrot.slane %v698, 4
          %v700 = vadd.f32 %v698, %v699
          %v701 = vrot.slane %v700, 2
          %v702 = vadd.f32 %v700, %v701
          %v703 = vrot.slane %v702, 1
          %v704 = vadd.f32 %v702, %v703
          %s705 = vtos %v704
          %s706 = sadd.f32 %s693, %s705
          %v707 = vld [vmem:[#allocation4] sm:$0xff]
          %vm708 = vcmask 261120
          %v709 = vsel %vm708, %v707, 0.0
          %710 = vadd.xlane.f32.xlu0 %v709
          %v711 = vpop.xlane.xlu0 %710
          %v712 = vrot.slane %v711, 4
          %v713 = vadd.f32 %v711, %v712
          %v714 = vrot.slane %v713, 2
          %v715 = vadd.f32 %v713, %v714
          %v716 = vrot.slane %v715, 1
          %v717 = vadd.f32 %v715, %v716
          %s718 = vtos %v717
          %s719 = sadd.f32 %s718, 0.0
          %v720 = vld [vmem:[#allocation5] sm:$0xff]
          %v721 = vsel %vm708, %v720, 0.0
          %722 = vadd.xlane.f32.xlu0 %v721
          %v723 = vpop.xlane.xlu0 %722
          %v724 = vrot.slane %v723, 4
          %v725 = vadd.f32 %v723, %v724
          %v726 = vrot.slane %v725, 2
          %v727 = vadd.f32 %v725, %v726
          %v728 = vrot.slane %v727, 1
          %v729 = vadd.f32 %v727, %v728
          %s730 = vtos %v729
          %s731 = sadd.f32 %s719, %s730
          %v732 = vld [vmem:[#allocation6] sm:$0xff]
          %v733 = vsel %vm708, %v732, 0.0
          %734 = vadd.xlane.f32.xlu0 %v733
          %v735 = vpop.xlane.xlu0 %734
          %v736 = vrot.slane %v735, 4
          %v737 = vadd.f32 %v735, %v736
          %v738 = vrot.slane %v737, 2
          %v739 = vadd.f32 %v737, %v738
          %v740 = vrot.slane %v739, 1
          %v741 = vadd.f32 %v739, %v740
          %s742 = vtos %v741
          %s743 = sadd.f32 %s731, %s742
          %v744 = vld [vmem:[#allocation7] sm:$0xff]
          %v745 = vsel %vm708, %v744, 0.0
          %746 = vadd.xlane.f32.xlu0 %v745
          %v747 = vpop.xlane.xlu0 %746
          %v748 = vrot.slane %v747, 4
          %v749 = vadd.f32 %v747, %v748
          %v750 = vrot.slane %v749, 2
          %v751 = vadd.f32 %v749, %v750
          %v752 = vrot.slane %v751, 1
          %v753 = vadd.f32 %v751, %v752
          %s754 = vtos %v753
          %s755 = sadd.f32 %s743, %s754
          %s756 = sld [smem:[#allocation8]]
          %s757 = smul.f32 %s756, 0.5
          %s758 = smul.f32 %s757, %s755
          %s759 = sadd.f32 %s706, %s758
          %v760 = vstv %s759
          %761 = vst [vmem:[%s563] sm:$0xff] %v760
        $region76: #{simple_loss_pallas.1} parent=47 // pred_fallthru
          _
        %p762 = scmp.lt.s32.totalorder %s32, 1
        %s763 = scalar_select %p762, %s32, 1
        %s764 = smul.addr %s763, 8
        %s765 = scalar_lea.vmem %s7, %s764
        // Predicated region
        $region77: #{simple_loss_pallas.1} parent=47 // pred_check
          %p766 = pneg %p271
        $region78: #{simple_loss_pallas.1} parent=47 // pred_check_branch
          %768 = sbr.rel (%p766) target = $region80
        $region79: #{simple_loss_pallas.1} parent=47 // pred_region
          _
        $region80: #{simple_loss_pallas.1} parent=47 // pred_fallthru
          _
      $region48: #{simple_loss_pallas.1} parent=5 // pred_fallthru
        _
      %p769 = scmp.le.s32.totalorder 2, %s23
      // Predicated region
      $region81: #{simple_loss_pallas.1} parent=5 // pred_check
        %p770 = pneg %p769
      $region82: #{simple_loss_pallas.1} parent=5 // pred_check_branch
        %772 = sbr.rel (%p770) target = $region84
      $region83: #{simple_loss_pallas.1} parent=5 // pred_region
        %s773 = ssub.s32 %s23, 2
        // Predicated region
        $region85: #{simple_loss_pallas.1} parent=83 // pred_check
          %p774 = pneg %p277
        $region86: #{simple_loss_pallas.1} parent=83 // pred_check_branch
          %776 = sbr.rel (%p774) target = $region88
        $region87: #{simple_loss_pallas.1} parent=83 // pred_region
          %p777 = scmp.lt.s32.totalorder %s34, 1
          %s778 = scalar_select %p777, %s34, 1
          %s779 = smul.addr %s778, 8
          %s780 = scalar_lea.vmem %s7, %s779
        $region88: #{simple_loss_pallas.1} parent=83 // pred_fallthru
          _
      $region84: #{simple_loss_pallas.1} parent=5 // pred_fallthru
        _
    $region6: #{simple_loss_pallas.1} parent=1 // loop_footer
      %s27 = sadd.s32 1, %s23
    $region7: #{simple_loss_pallas.1} parent=1 // loop_footer_branch
      %22 = sbr.rel target = $region3
    $region8: #{simple_loss_pallas.1} parent=1 // loop_exit
      _
    %781 = vsyncpa [#allocation10], 1
    %s782 = scalar_lea.sflag [#allocation10], 1
    %783 = vsyncpa %s782, 1
    %784 = vsyncpa [#allocation12], 1
    %s785 = scalar_lea.sflag [#allocation12], 1
    %786 = vsyncpa %s785, 1
    %787 = vsyncpa [#allocation15], 1
    %s788 = scalar_lea.sflag [#allocation15], 1
    %789 = vsyncpa %s788, 1

</llo_original>
